<compile_context>
chip_gen: v6e
topology: v6e:2x2x1
jax: 0.10.0
libtpu: 0.0.40
codegen_flags: <defaults>
</compile_context>

<pallas_src>
import functools

import jax
import jax.numpy as jnp
from jax.experimental import pallas as pl
from jax.experimental.pallas import tpu as pltpu

LANE = 128


def _round_up(x, m):
    return ((x + m - 1) // m) * m


def _pad2(x, rows, cols):
    return jnp.pad(x, ((0, rows - x.shape[0]), (0, cols - x.shape[1])))


# --------------------------------------------------------------------------- #
# Fused Pallas kernel: all decoder layers + all head applications
# --------------------------------------------------------------------------- #
def _gvd_fused_kernel(
    x_ref, w1_ref, b1_ref, w2_ref, b2_ref, hw_ref, hb_ref,
    logits_ref, feats_ref,
    *, num_dec_layers, head_apply_ids,
):
    """Fused GVD forward.

    x_ref:      (N, Dp)      initial (lane-padded) group features, f32
    w1_ref:     (L, Dp, Hp)  stacked decoder-layer weights
    b1_ref:     (L, 1,  Hp)
    w2_ref:     (L, Hp, Dp)
    b2_ref:     (L, 1,  Dp)
    hw_ref:     (Dp, Cp)     shared classification head weight
    hb_ref:     (1,  Cp)
    logits_ref: (num_apply, N, Cp)  one lane-dense slab per applied head id
    feats_ref:  (N, Dp)      final group features (lane-padded)
    """
    x = x_ref[...]                 # activations stay resident (vregs/VMEM)
    hw = hw_ref[...]               # head params loaded ONCE, reused for all ids
    hb = hb_ref[...]

    slot = 0
    if 0 in head_apply_ids:
        logits_ref[slot] = jnp.dot(x, hw, preferred_element_type=jnp.float32) + hb
        slot += 1

    # static Python loop: unrolled at trace time (L is tiny)
    for layer in range(num_dec_layers):
        w1 = w1_ref[layer]         # (Dp, Hp)
        b1 = b1_ref[layer]         # (1,  Hp)
        w2 = w2_ref[layer]         # (Hp, Dp)
        b2 = b2_ref[layer]         # (1,  Dp)
        h = jnp.maximum(jnp.dot(x, w1, preferred_element_type=jnp.float32) + b1, 0.0)
        x = x + jnp.dot(h, w2, preferred_element_type=jnp.float32) + b2
        if (layer + 1) in head_apply_ids:
            logits_ref[slot] = jnp.dot(x, hw, preferred_element_type=jnp.float32) + hb
            slot += 1

    feats_ref[...] = x


# --------------------------------------------------------------------------- #
# GVD head (learned group init, residual-MLP decoder layers, linear head)
# --------------------------------------------------------------------------- #
class GVDPallas:
    def __init__(
        self,
        num_groups=8,
        group_feat_size=32,
        num_dec_layers=2,
        mlp_hidden=64,
        num_classes=16,
        head_apply_ids=None,
        key=jax.random.PRNGKey(0),
    ):
        self.num_groups = num_groups
        self.feat_size = group_feat_size
        self.hidden = mlp_hidden
        self.num_classes = num_classes
        self.num_dec_layers = num_dec_layers
        self.head_apply_ids = tuple(sorted(
            head_apply_ids if head_apply_ids is not None
            else range(num_dec_layers + 1)
        ))

        keys = jax.random.split(key, 3 + 4 * num_dec_layers)
        k = iter(keys)
        d, h, c = group_feat_size, mlp_hidden, num_classes

        # group_init_feats: Parameter [num_groups, group_feat_size]
        self.group_init_feats = jax.random.normal(next(k), (num_groups, d), jnp.float32)

        # decoder layer parameters (residual MLP per layer)
        self.dec_params = []
        for _ in range(num_dec_layers):
            w1 = jax.random.normal(next(k), (d, h), jnp.float32) * (1.0 / jnp.sqrt(d))
            b1 = jax.random.normal(next(k), (1, h), jnp.float32) * 0.01
            w2 = jax.random.normal(next(k), (h, d), jnp.float32) * (1.0 / jnp.sqrt(h))
            b2 = jax.random.normal(next(k), (1, d), jnp.float32) * 0.01
            self.dec_params.append((w1, b1, w2, b2))

        # shared classification head
        self.head_w = jax.random.normal(next(k), (d, c), jnp.float32) * (1.0 / jnp.sqrt(d))
        self.head_b = jax.random.normal(next(k), (1, c), jnp.float32) * 0.01

        # ---- pre-pad + stack parameters once (lane-dense, 128 multiples) ---- #
        self.dp = max(_round_up(d, LANE), LANE)
        self.hp = max(_round_up(h, LANE), LANE)
        self.cp = max(_round_up(c, LANE), LANE)

        self.group_init_feats_p = jnp.pad(
            self.group_init_feats, ((0, 0), (0, self.dp - d)))
        self.w1_p = jnp.stack([_pad2(w1, self.dp, self.hp) for (w1, _, _, _) in self.dec_params])
        self.b1_p = jnp.stack([_pad2(b1, 1, self.hp) for (_, b1, _, _) in self.dec_params])
        self.w2_p = jnp.stack([_pad2(w2, self.hp, self.dp) for (_, _, w2, _) in self.dec_params])
        self.b2_p = jnp.stack([_pad2(b2, 1, self.dp) for (_, _, _, b2) in self.dec_params])
        self.head_w_p = _pad2(self.head_w, self.dp, self.cp)
        self.head_b_p = _pad2(self.head_b, 1, self.cp)

    # ------------------------------------------------------------------ #
    def group_init(self, storage_dict):
        feat_maps = storage_dict["feat_maps"]
        batch_size = feat_maps[0].shape[0]
        # expand + flatten(0, 1): [B, G, Dp] -> [B*G, Dp]  (lane-padded)
        group_init_feats = jnp.broadcast_to(
            self.group_init_feats_p[None, :, :],
            (batch_size, self.num_groups, self.dp),
        ).reshape(batch_size * self.num_groups, self.dp)
        cum_feats_batch = jnp.arange(batch_size + 1, dtype=jnp.int32) * self.num_groups
        storage_dict["cum_feats_batch"] = cum_feats_batch
        return group_init_feats

    # ------------------------------------------------------------------ #
    def forward(self, feat_maps, tgt_dict=None, images=None, visualize=False):
        storage_dict = {"feat_maps": feat_maps, "images": images}
        loss_dict = {} if tgt_dict is not None else None
        analysis_dict = {}
        pred_dicts = []
        images_dict = {} if visualize else None

        # group initialization (learned mode)
        group_feats_p = self.group_init(storage_dict)
        n = group_feats_p.shape[0]

        cum_feats_batch = storage_dict["cum_feats_batch"]
        batch_size = cum_feats_batch.shape[0] - 1
        batch_ids = jnp.repeat(jnp.arange(batch_size, dtype=jnp.int32), self.num_groups)
        storage_dict["batch_ids"] = batch_ids

        applied_ids = tuple(i for i in self.head_apply_ids
                            if 0 <= i <= self.num_dec_layers)
        num_apply = len(applied_ids)

        kernel = functools.partial(
            _gvd_fused_kernel,
            num_dec_layers=self.num_dec_layers,
            head_apply_ids=applied_ids,
        )
        logits_p, feats_p = pl.pallas_call(
            kernel,
            out_shape=(
                jax.ShapeDtypeStruct((num_apply, n, self.cp), jnp.float32),
                jax.ShapeDtypeStruct((n, self.dp), jnp.float32),
            ),
            in_specs=[pl.BlockSpec(memory_space=pltpu.MemorySpace.VMEM)] * 7,
            out_specs=(
                pl.BlockSpec(memory_space=pltpu.MemorySpace.VMEM),
                pl.BlockSpec(memory_space=pltpu.MemorySpace.VMEM),
            ),
        )(group_feats_p, self.w1_p, self.b1_p, self.w2_p, self.b2_p,
          self.head_w_p, self.head_b_p)

        # strip lane padding outside the kernel (cheap XLA slices)
        for slot, head_id in enumerate(applied_ids):
            pred_dicts.append(
                {"id": head_id, "logits": logits_p[slot, :, : self.num_classes]})
        group_feats = feats_p[:, : self.feat_size]

        return_list = [analysis_dict]
        if tgt_dict is not None:
            return_list.insert(0, loss_dict)
        return_list.insert(0, pred_dicts)
        if visualize:
            return_list.append(images_dict)
        return return_list, group_feats, storage_dict


# --------------------------------------------------------------------------- #
# Main
# --------------------------------------------------------------------------- #
if __name__ == "__main__":
    key = jax.random.PRNGKey(0)
    k_feat, k_model = jax.random.split(key)

    # feat_maps: list of NCHW feature maps (only the batch dim is used by 'learned' init)
    batch_size, feat_size, fH, fW = 2, 4, 16, 16
    feat_maps = [
        jax.random.normal(k_feat, (batch_size, feat_size, fH, fW), dtype=jnp.float32)
    ]

    gvd = GVDPallas(
        num_groups=8,
        group_feat_size=32,
        num_dec_layers=2,
        mlp_hidden=64,
        num_classes=16,
        key=k_model,
    )

    return_list, group_feats, storage_dict = gvd.forward(feat_maps)

    # block on all Pallas outputs
    jax.block_until_ready(group_feats)
    for pd in return_list[0]:
        jax.block_until_ready(pd["logits"])

    # reference computation in plain JAX with the UNPADDED parameters
    x = jnp.broadcast_to(
        gvd.group_init_feats[None],
        (batch_size, gvd.num_groups, gvd.feat_size),
    ).reshape(batch_size * gvd.num_groups, gvd.feat_size)
    ref_logits = {0: x @ gvd.head_w + gvd.head_b}
    for layer_id, (w1, b1, w2, b2) in enumerate(gvd.dec_params, 1):
        x = x + jnp.maximum(x @ w1 + b1, 0.0) @ w2 + b2
        ref_logits[layer_id] = x @ gvd.head_w + gvd.head_b

    assert jnp.allclose(x, group_feats, atol=1e-4, rtol=1e-4)
    for pd in return_list[0]:
        assert jnp.allclose(ref_logits[pd["id"]], pd["logits"], atol=1e-4, rtol=1e-4)

    print("KERNEL_OK")
</pallas_src>

<mosaic_0001>
module attributes {stable_mosaic.version = 11 : i64} {
  func.func @_gvd_fused_kernel(%arg0: memref<16x128xf32, #tpu.memory_space<vmem>>, %arg1: memref<2x128x128xf32, #tpu.memory_space<vmem>>, %arg2: memref<2x1x128xf32, #tpu.memory_space<vmem>>, %arg3: memref<2x128x128xf32, #tpu.memory_space<vmem>>, %arg4: memref<2x1x128xf32, #tpu.memory_space<vmem>>, %arg5: memref<128x128xf32, #tpu.memory_space<vmem>>, %arg6: memref<1x128xf32, #tpu.memory_space<vmem>>, %arg7: memref<3x16x128xf32, #tpu.memory_space<vmem>>, %arg8: memref<16x128xf32, #tpu.memory_space<vmem>>) attributes {dimension_semantics = [], scalar_prefetch = 0 : i64, scratch_operands = 0 : i64, tpu.core_type = #tpu.core_type<tc>} {
    %c0 = arith.constant 0 : index
    %c0_0 = arith.constant 0 : index
    %0 = vector.load %arg0[%c0, %c0_0] : memref<16x128xf32, #tpu.memory_space<vmem>>, vector<16x128xf32>
    %c0_1 = arith.constant 0 : index
    %c0_2 = arith.constant 0 : index
    %1 = vector.load %arg5[%c0_1, %c0_2] : memref<128x128xf32, #tpu.memory_space<vmem>>, vector<128x128xf32>
    %c0_3 = arith.constant 0 : index
    %c0_4 = arith.constant 0 : index
    %2 = vector.load %arg6[%c0_3, %c0_4] : memref<1x128xf32, #tpu.memory_space<vmem>>, vector<1x128xf32>
    %cst = arith.constant dense<0.000000e+00> : vector<16x128xf32>
    %3 = tpu.matmul %0, %1, %cst {dimension_numbers = #tpu.dot_dimension_numbers<[1], [0], [0], [1], [0, 0, 1, 1], [], []>} : vector<16x128xf32>, vector<128x128xf32>, vector<16x128xf32> -> vector<16x128xf32>
    %4 = vector.broadcast %2 : vector<1x128xf32> to vector<16x128xf32>
    %5 = arith.addf %3, %4 : vector<16x128xf32>
    %c0_5 = arith.constant 0 : index
    %c0_6 = arith.constant 0 : index
    %c0_7 = arith.constant 0 : index
    %6 = vector.load %arg7[%c0_5, %c0_6, %c0_7] : memref<3x16x128xf32, #tpu.memory_space<vmem>>, vector<1x16x128xf32>
    %7 = vector.shape_cast %6 : vector<1x16x128xf32> to vector<16x128xf32>
    %8 = vector.shape_cast %5 : vector<16x128xf32> to vector<1x16x128xf32>
    tpu.vector_store %arg7[%c0_5, %c0_6, %c0_7], %8 {strides = array<i32>} : memref<3x16x128xf32, #tpu.memory_space<vmem>>, vector<1x16x128xf32>,
    %c0_8 = arith.constant 0 : index
    %c0_9 = arith.constant 0 : index
    %c0_10 = arith.constant 0 : index
    %9 = vector.load %arg1[%c0_8, %c0_9, %c0_10] : memref<2x128x128xf32, #tpu.memory_space<vmem>>, vector<1x128x128xf32>
    %10 = vector.shape_cast %9 : vector<1x128x128xf32> to vector<128x128xf32>
    %c0_11 = arith.constant 0 : index
    %c0_12 = arith.constant 0 : index
    %c0_13 = arith.constant 0 : index
    %11 = vector.load %arg2[%c0_11, %c0_12, %c0_13] : memref<2x1x128xf32, #tpu.memory_space<vmem>>, vector<1x1x128xf32>
    %12 = vector.shape_cast %11 : vector<1x1x128xf32> to vector<1x128xf32>
    %c0_14 = arith.constant 0 : index
    %c0_15 = arith.constant 0 : index
    %c0_16 = arith.constant 0 : index
    %13 = vector.load %arg3[%c0_14, %c0_15, %c0_16] : memref<2x128x128xf32, #tpu.memory_space<vmem>>, vector<1x128x128xf32>
    %14 = vector.shape_cast %13 : vector<1x128x128xf32> to vector<128x128xf32>
    %c0_17 = arith.constant 0 : index
    %c0_18 = arith.constant 0 : index
    %c0_19 = arith.constant 0 : index
    %15 = vector.load %arg4[%c0_17, %c0_18, %c0_19] : memref<2x1x128xf32, #tpu.memory_space<vmem>>, vector<1x1x128xf32>
    %16 = vector.shape_cast %15 : vector<1x1x128xf32> to vector<1x128xf32>
    %cst_20 = arith.constant dense<0.000000e+00> : vector<16x128xf32>
    %17 = tpu.matmul %0, %10, %cst_20 {dimension_numbers = #tpu.dot_dimension_numbers<[1], [0], [0], [1], [0, 0, 1, 1], [], []>} : vector<16x128xf32>, vector<128x128xf32>, vector<16x128xf32> -> vector<16x128xf32>
    %18 = vector.broadcast %12 : vector<1x128xf32> to vector<16x128xf32>
    %19 = arith.addf %17, %18 : vector<16x128xf32>
    %cst_21 = arith.constant 0.000000e+00 : f32
    %20 = vector.broadcast %cst_21 : f32 to vector<16x128xf32>
    %21 = arith.maximumf %19, %20 : vector<16x128xf32>
    %cst_22 = arith.constant dense<0.000000e+00> : vector<16x128xf32>
    %22 = tpu.matmul %21, %14, %cst_22 {dimension_numbers = #tpu.dot_dimension_numbers<[1], [0], [0], [1], [0, 0, 1, 1], [], []>} : vector<16x128xf32>, vector<128x128xf32>, vector<16x128xf32> -> vector<16x128xf32>
    %23 = arith.addf %0, %22 : vector<16x128xf32>
    %24 = vector.broadcast %16 : vector<1x128xf32> to vector<16x128xf32>
    %25 = arith.addf %23, %24 : vector<16x128xf32>
    %cst_23 = arith.constant dense<0.000000e+00> : vector<16x128xf32>
    %26 = tpu.matmul %25, %1, %cst_23 {dimension_numbers = #tpu.dot_dimension_numbers<[1], [0], [0], [1], [0, 0, 1, 1], [], []>} : vector<16x128xf32>, vector<128x128xf32>, vector<16x128xf32> -> vector<16x128xf32>
    %27 = vector.broadcast %2 : vector<1x128xf32> to vector<16x128xf32>
    %28 = arith.addf %26, %27 : vector<16x128xf32>
    %c1 = arith.constant 1 : index
    %c0_24 = arith.constant 0 : index
    %c0_25 = arith.constant 0 : index
    %29 = vector.load %arg7[%c1, %c0_24, %c0_25] : memref<3x16x128xf32, #tpu.memory_space<vmem>>, vector<1x16x128xf32>
    %30 = vector.shape_cast %29 : vector<1x16x128xf32> to vector<16x128xf32>
    %31 = vector.shape_cast %28 : vector<16x128xf32> to vector<1x16x128xf32>
    tpu.vector_store %arg7[%c1, %c0_24, %c0_25], %31 {strides = array<i32>} : memref<3x16x128xf32, #tpu.memory_space<vmem>>, vector<1x16x128xf32>,
    %c1_26 = arith.constant 1 : index
    %c0_27 = arith.constant 0 : index
    %c0_28 = arith.constant 0 : index
    %32 = vector.load %arg1[%c1_26, %c0_27, %c0_28] : memref<2x128x128xf32, #tpu.memory_space<vmem>>, vector<1x128x128xf32>
    %33 = vector.shape_cast %32 : vector<1x128x128xf32> to vector<128x128xf32>
    %c1_29 = arith.constant 1 : index
    %c0_30 = arith.constant 0 : index
    %c0_31 = arith.constant 0 : index
    %34 = vector.load %arg2[%c1_29, %c0_30, %c0_31] : memref<2x1x128xf32, #tpu.memory_space<vmem>>, vector<1x1x128xf32>
    %35 = vector.shape_cast %34 : vector<1x1x128xf32> to vector<1x128xf32>
    %c1_32 = arith.constant 1 : index
    %c0_33 = arith.constant 0 : index
    %c0_34 = arith.constant 0 : index
    %36 = vector.load %arg3[%c1_32, %c0_33, %c0_34] : memref<2x128x128xf32, #tpu.memory_space<vmem>>, vector<1x128x128xf32>
    %37 = vector.shape_cast %36 : vector<1x128x128xf32> to vector<128x128xf32>
    %c1_35 = arith.constant 1 : index
    %c0_36 = arith.constant 0 : index
    %c0_37 = arith.constant 0 : index
    %38 = vector.load %arg4[%c1_35, %c0_36, %c0_37] : memref<2x1x128xf32, #tpu.memory_space<vmem>>, vector<1x1x128xf32>
    %39 = vector.shape_cast %38 : vector<1x1x128xf32> to vector<1x128xf32>
    %cst_38 = arith.constant dense<0.000000e+00> : vector<16x128xf32>
    %40 = tpu.matmul %25, %33, %cst_38 {dimension_numbers = #tpu.dot_dimension_numbers<[1], [0], [0], [1], [0, 0, 1, 1], [], []>} : vector<16x128xf32>, vector<128x128xf32>, vector<16x128xf32> -> vector<16x128xf32>
    %41 = vector.broadcast %35 : vector<1x128xf32> to vector<16x128xf32>
    %42 = arith.addf %40, %41 : vector<16x128xf32>
    %cst_39 = arith.constant 0.000000e+00 : f32
    %43 = vector.broadcast %cst_39 : f32 to vector<16x128xf32>
    %44 = arith.maximumf %42, %43 : vector<16x128xf32>
    %cst_40 = arith.constant dense<0.000000e+00> : vector<16x128xf32>
    %45 = tpu.matmul %44, %37, %cst_40 {dimension_numbers = #tpu.dot_dimension_numbers<[1], [0], [0], [1], [0, 0, 1, 1], [], []>} : vector<16x128xf32>, vector<128x128xf32>, vector<16x128xf32> -> vector<16x128xf32>
    %46 = arith.addf %25, %45 : vector<16x128xf32>
    %47 = vector.broadcast %39 : vector<1x128xf32> to vector<16x128xf32>
    %48 = arith.addf %46, %47 : vector<16x128xf32>
    %cst_41 = arith.constant dense<0.000000e+00> : vector<16x128xf32>
    %49 = tpu.matmul %48, %1, %cst_41 {dimension_numbers = #tpu.dot_dimension_numbers<[1], [0], [0], [1], [0, 0, 1, 1], [], []>} : vector<16x128xf32>, vector<128x128xf32>, vector<16x128xf32> -> vector<16x128xf32>
    %50 = vector.broadcast %2 : vector<1x128xf32> to vector<16x128xf32>
    %51 = arith.addf %49, %50 : vector<16x128xf32>
    %c2 = arith.constant 2 : index
    %c0_42 = arith.constant 0 : index
    %c0_43 = arith.constant 0 : index
    %52 = vector.load %arg7[%c2, %c0_42, %c0_43] : memref<3x16x128xf32, #tpu.memory_space<vmem>>, vector<1x16x128xf32>
    %53 = vector.shape_cast %52 : vector<1x16x128xf32> to vector<16x128xf32>
    %54 = vector.shape_cast %51 : vector<16x128xf32> to vector<1x16x128xf32>
    tpu.vector_store %arg7[%c2, %c0_42, %c0_43], %54 {strides = array<i32>} : memref<3x16x128xf32, #tpu.memory_space<vmem>>, vector<1x16x128xf32>,
    %c0_44 = arith.constant 0 : index
    %c0_45 = arith.constant 0 : index
    %55 = vector.load %arg8[%c0_44, %c0_45] : memref<16x128xf32, #tpu.memory_space<vmem>>, vector<16x128xf32>
    tpu.vector_store %arg8[%c0_44, %c0_45], %48 {strides = array<i32>} : memref<16x128xf32, #tpu.memory_space<vmem>>, vector<16x128xf32>,
    return
  }
}

</mosaic_0001>

<llo_original>
// kernel: tpu_custom_call.1
$region0: #{tpu_custom_call.1}
  #allocation0 [shape = 'u32[]', space=smem, size = 0x4, offset = 0x4, fixed_abs, tag = 'smem constant byte address 0x4 - core index']
  #allocation1 [shape = 'u32[144,128]{1,0:T(1,128)}', space=vmem, size = 0x12000, scoped, tag = 'internal scratch']
  %s0 = inlined_call_operand.hbm [shape: f32[16,128], index: 0, kind: input, shape index: {}]
  %s1 = inlined_call_operand.hbm [shape: f32[2,128,128], index: 1, kind: input, shape index: {}]
  %s2 = inlined_call_operand.vmem [shape: f32[2,1,128], index: 2, kind: input, shape index: {}]
  %s3 = inlined_call_operand.hbm [shape: f32[2,128,128], index: 3, kind: input, shape index: {}]
  %s4 = inlined_call_operand.vmem [shape: f32[2,1,128], index: 4, kind: input, shape index: {}]
  %s5 = inlined_call_operand.hbm [shape: f32[128,128], index: 5, kind: input, shape index: {}]
  %s6 = inlined_call_operand.vmem [shape: f32[1,128], index: 6, kind: input, shape index: {}]
  %s7 = inlined_call_operand.hbm [shape: f32[3,16,128], index: 7, kind: output, shape index: {0}]
  %s8 = inlined_call_operand.hbm [shape: f32[16,128], index: 8, kind: output, shape index: {1}]
  %9 = xla_tuple %s7, %s8
  %s10 = sld [smem:[#allocation0]]
  $region62: #{tpu_custom_call.1} parent=0
    _
  %s12 = ssub.s32 1, %s10
  %s13 = scalar_select 0, %s12, %s10
  $region1: #{tpu_custom_call.1} parent=0
    #allocation2 [shape = 'u8[8192]{0}', space=vmem, size = 0x2000, scoped, tag = 'input window, operand 0, single buffered']
    #allocation3 [shape = 's32[1]{0}', space=sflag, size = 0x4, scoped, tag = 'scoped memory for tpu_custom_call.1']
    #allocation4 [shape = 's32[1]{0}', space=sflag, size = 0x4, scoped, tag = 'scoped memory for tpu_custom_call.1']
    #allocation5 [shape = 'u8[131072]{0}', space=vmem, size = 0x20000, scoped, tag = 'input window, operand 1, single buffered']
    #allocation6 [shape = 's32[1]{0}', space=sflag, size = 0x4, scoped, tag = 'scoped memory for tpu_custom_call.1']
    #allocation7 [shape = 'u8[131072]{0}', space=vmem, size = 0x20000, scoped, tag = 'input window, operand 3, single buffered']
    #allocation8 [shape = 'u8[65536]{0}', space=vmem, size = 0x10000, scoped, tag = 'input window, operand 5, single buffered']
    #allocation9 [shape = 's32[1]{0}', space=sflag, size = 0x4, scoped, tag = 'scoped memory for tpu_custom_call.1']
    #allocation10 [shape = 'u8[24576]{0}', space=vmem, size = 0x6000, scoped, tag = 'output window, operand 0, single buffered']
    #allocation11 [shape = 'u8[8192]{0}', space=vmem, size = 0x2000, scoped, tag = 'output window, operand 1, single buffered']
    #allocation12 [shape = 's32[1]{0}', space=sflag, size = 0x4, scoped, tag = 'scoped memory for tpu_custom_call.1']
    %14 = vsyncpa [#allocation3], 0
    %15 = vsyncpa [#allocation6], 0
    %16 = vsyncpa [#allocation9], 0
    %17 = vsyncpa [#allocation4], 0
    %18 = vsyncpa [#allocation12], 0
    // Predicated region
    $region2: #{tpu_custom_call.1} parent=1 // pred_check
      _
    $region3: #{tpu_custom_call.1} parent=1 // pred_check_branch
      %20 = sbr.rel (0) target = $region5
    $region4: #{tpu_custom_call.1} parent=1 // pred_region
      %s22 = ssub.s32 256, 256
      %23 = vsyncadd [#allocation3], %s22
      %s24 = sshll.u32 [#allocation2], 4
      %s25 = int_to_ptr.vmem [resolvable:$true] %s24
      %30 = dma.hbm_to_vmem [thread:$0]  %s0, 256, %s25, [#allocation3], 128, 128, 8
    $region5: #{tpu_custom_call.1} parent=1 // pred_fallthru
      _
    // Predicated region
    $region6: #{tpu_custom_call.1} parent=1 // pred_check
      _
    $region7: #{tpu_custom_call.1} parent=1 // pred_check_branch
      %32 = sbr.rel (0) target = $region9
    $region8: #{tpu_custom_call.1} parent=1 // pred_region
      %s34 = ssub.s32 4096, 4096
      %35 = vsyncadd [#allocation6], %s34
      %s36 = sshll.u32 [#allocation5], 4
      %s37 = int_to_ptr.vmem [resolvable:$true] %s36
      %42 = dma.hbm_to_vmem [thread:$0]  %s1, 4096, %s37, [#allocation6], 128, 128, 8
    $region9: #{tpu_custom_call.1} parent=1 // pred_fallthru
      _
    // Predicated region
    $region10: #{tpu_custom_call.1} parent=1 // pred_check
      _
    $region11: #{tpu_custom_call.1} parent=1 // pred_check_branch
      %44 = sbr.rel (0) target = $region13
    $region12: #{tpu_custom_call.1} parent=1 // pred_region
      _
    $region13: #{tpu_custom_call.1} parent=1 // pred_fallthru
      _
    // Predicated region
    $region14: #{tpu_custom_call.1} parent=1 // pred_check
      _
    $region15: #{tpu_custom_call.1} parent=1 // pred_check_branch
      %46 = sbr.rel (0) target = $region17
    $region16: #{tpu_custom_call.1} parent=1 // pred_region
      %s48 = ssub.s32 4096, 4096
      %49 = vsyncadd [#allocation6], %s48
      %s50 = sshll.u32 [#allocation7], 4
      %s51 = int_to_ptr.vmem [resolvable:$true] %s50
      %56 = dma.hbm_to_vmem [thread:$0]  %s3, 4096, %s51, [#allocation6], 128, 128, 8
    $region17: #{tpu_custom_call.1} parent=1 // pred_fallthru
      _
    // Predicated region
    $region18: #{tpu_custom_call.1} parent=1 // pred_check
      _
    $region19: #{tpu_custom_call.1} parent=1 // pred_check_branch
      %58 = sbr.rel (0) target = $region21
    $region20: #{tpu_custom_call.1} parent=1 // pred_region
      _
    $region21: #{tpu_custom_call.1} parent=1 // pred_fallthru
      _
    // Predicated region
    $region22: #{tpu_custom_call.1} parent=1 // pred_check
      _
    $region23: #{tpu_custom_call.1} parent=1 // pred_check_branch
      %60 = sbr.rel (0) target = $region25
    $region24: #{tpu_custom_call.1} parent=1 // pred_region
      %s62 = ssub.s32 2048, 2048
      %63 = vsyncadd [#allocation9], %s62
      %s64 = sshll.u32 [#allocation8], 4
      %s65 = int_to_ptr.vmem [resolvable:$true] %s64
      %70 = dma.hbm_to_vmem [thread:$0]  %s5, 2048, %s65, [#allocation9], 128, 128, 8
    $region25: #{tpu_custom_call.1} parent=1 // pred_fallthru
      _
    // Predicated region
    $region26: #{tpu_custom_call.1} parent=1 // pred_check
      _
    $region27: #{tpu_custom_call.1} parent=1 // pred_check_branch
      %72 = sbr.rel (0) target = $region29
    $region28: #{tpu_custom_call.1} parent=1 // pred_region
      _
    $region29: #{tpu_custom_call.1} parent=1 // pred_fallthru
      _
    // Predicated region
    $region30: #{tpu_custom_call.1} parent=1 // pred_check
      _
    $region31: #{tpu_custom_call.1} parent=1 // pred_check_branch
      %74 = sbr.rel (0) target = $region33
    $region32: #{tpu_custom_call.1} parent=1 // pred_region
      %75 = dma.done [#allocation3], 256
    $region33: #{tpu_custom_call.1} parent=1 // pred_fallthru
      _
    // Predicated region
    $region34: #{tpu_custom_call.1} parent=1 // pred_check
      _
    $region35: #{tpu_custom_call.1} parent=1 // pred_check_branch
      %77 = sbr.rel (0) target = $region37
    $region36: #{tpu_custom_call.1} parent=1 // pred_region
      %78 = dma.done [#allocation6], 4096
    $region37: #{tpu_custom_call.1} parent=1 // pred_fallthru
      _
    // Predicated region
    $region38: #{tpu_custom_call.1} parent=1 // pred_check
      _
    $region39: #{tpu_custom_call.1} parent=1 // pred_check_branch
      %80 = sbr.rel (0) target = $region41
    $region40: #{tpu_custom_call.1} parent=1 // pred_region
      %81 = dma.done [#allocation6], 4096
    $region41: #{tpu_custom_call.1} parent=1 // pred_fallthru
      _
    // Predicated region
    $region42: #{tpu_custom_call.1} parent=1 // pred_check
      _
    $region43: #{tpu_custom_call.1} parent=1 // pred_check_branch
      %83 = sbr.rel (0) target = $region45
    $region44: #{tpu_custom_call.1} parent=1 // pred_region
      %84 = dma.done [#allocation9], 2048
    $region45: #{tpu_custom_call.1} parent=1 // pred_fallthru
      _
    %v85 = vld [vmem:[#allocation2] sm:$0xff]
    %v86 = vld [vmem:[#allocation2 + $0x8] sm:$0xff]
    %v87 = vld [vmem:[#allocation8] sm:$0xff]
    %v88 = vld [vmem:[#allocation8 + $0x8] sm:$0xff]
    %v89 = vld [vmem:[#allocation8 + $0x10] sm:$0xff]
    %v90 = vld [vmem:[#allocation8 + $0x18] sm:$0xff]
    %v91 = vld [vmem:[#allocation8 + $0x20] sm:$0xff]
    %v92 = vld [vmem:[#allocation8 + $0x28] sm:$0xff]
    %v93 = vld [vmem:[#allocation8 + $0x30] sm:$0xff]
    %v94 = vld [vmem:[#allocation8 + $0x38] sm:$0xff]
    %v95 = vld [vmem:[#allocation8 + $0x40] sm:$0xff]
    %v96 = vld [vmem:[#allocation8 + $0x48] sm:$0xff]
    %v97 = vld [vmem:[#allocation8 + $0x50] sm:$0xff]
    %v98 = vld [vmem:[#allocation8 + $0x58] sm:$0xff]
    %v99 = vld [vmem:[#allocation8 + $0x60] sm:$0xff]
    %v100 = vld [vmem:[#allocation8 + $0x68] sm:$0xff]
    %v101 = vld [vmem:[#allocation8 + $0x70] sm:$0xff]
    %v102 = vld [vmem:[#allocation8 + $0x78] sm:$0xff]
    %v103 = vld [vmem:[%s6] sm:$0x1]
    %v105 = vlaneseq
    %v106 = vshrl.u32 %v105, 7
    %v107 = vsub.s32 0, %v106
    %v108 = vrot.slane %v103, %v107
    %110 = vmatprep.subr.mxu0 0.0
    %111 = vmatpush1.msra.mxu0 %v102
    %112 = vmatprep.subr.mxu0 0.0
    %113 = vmatpush1.msra.mxu0 %v101
    %114 = vmatprep.subr.mxu0 0.0
    %115 = vmatpush1.msra.mxu0 %v100
    %116 = vmatprep.subr.mxu0 0.0
    %117 = vmatpush1.msra.mxu0 %v99
    %118 = vmatprep.subr.mxu0 0.0
    %119 = vmatpush1.msra.mxu0 %v98
    %120 = vmatprep.subr.mxu0 0.0
    %121 = vmatpush1.msra.mxu0 %v97
    %122 = vmatprep.subr.mxu0 0.0
    %123 = vmatpush1.msra.mxu0 %v96
    %124 = vmatprep.subr.mxu0 0.0
    %125 = vmatpush1.msra.mxu0 %v95
    %126 = vmatprep.subr.mxu0 0.0
    %127 = vmatpush1.msra.mxu0 %v94
    %128 = vmatprep.subr.mxu0 0.0
    %129 = vmatpush1.msra.mxu0 %v93
    %130 = vmatprep.subr.mxu0 0.0
    %131 = vmatpush1.msra.mxu0 %v92
    %132 = vmatprep.subr.mxu0 0.0
    %133 = vmatpush1.msra.mxu0 %v91
    %134 = vmatprep.subr.mxu0 0.0
    %135 = vmatpush1.msra.mxu0 %v90
    %136 = vmatprep.subr.mxu0 0.0
    %137 = vmatpush1.msra.mxu0 %v89
    %138 = vmatprep.subr.mxu0 0.0
    %139 = vmatpush1.msra.mxu0 %v88
    %140 = vmatprep.subr.mxu0 0.0
    %141 = vmatpush1.msra.mxu0 %v87
    %142 = vmatprep.subr.mxu0 0.0
    %143 = vmatpush2.msra.mxu0 0.0
    %144 = vmatprep.subr.mxu0 0.0
    %145 = vmatpush2.msra.mxu0 0.0
    %146 = vmatprep.subr.mxu0 0.0
    %147 = vmatpush2.msra.mxu0 0.0
    %148 = vmatprep.subr.mxu0 0.0
    %149 = vmatpush2.msra.mxu0 0.0
    %150 = vmatprep.subr.mxu0 0.0
    %151 = vmatpush2.msra.mxu0 0.0
    %152 = vmatprep.subr.mxu0 0.0
    %153 = vmatpush2.msra.mxu0 0.0
    %154 = vmatprep.subr.mxu0 0.0
    %155 = vmatpush2.msra.mxu0 0.0
    %156 = vmatprep.subr.mxu0 0.0
    %157 = vmatpush2.msra.mxu0 0.0
    %158 = vmatprep.subr.mxu0 0.0
    %159 = vmatpush2.msra.mxu0 0.0
    %160 = vmatprep.subr.mxu0 0.0
    %161 = vmatpush2.msra.mxu0 0.0
    %162 = vmatprep.subr.mxu0 0.0
    %163 = vmatpush2.msra.mxu0 0.0
    %164 = vmatprep.subr.mxu0 0.0
    %165 = vmatpush2.msra.mxu0 0.0
    %166 = vmatprep.subr.mxu0 0.0
    %167 = vmatpush2.msra.mxu0 0.0
    %168 = vmatprep.subr.mxu0 0.0
    %169 = vmatpush2.msra.mxu0 0.0
    %170 = vmatprep.subr.mxu0 0.0
    %171 = vmatpush2.msra.mxu0 0.0
    %172 = vmatprep.subr.mxu0 0.0
    %173 = vmatpush2.msra.mxu0 0.0
    %174 = vmatprep.mubr.f32.mxu0 0.0
    %175 = vmatmul.mubr.f32.gmra.mxu0 %v85
    %v176 = vpop.f32.mrf.mxu0
    %v177 = vadd.f32 %v108, %v176
    %v178 = vpop.f32.mrf.mxu0
    %179 = vmatprep.mubr.f32.mxu0 0.0
    %180 = vmatmul.mubr.f32.gmra.mxu0 %v86
    %v181 = vpop.f32.mrf.mxu0
    %v182 = vadd.f32 %v108, %v181
    %v183 = vpop.f32.mrf.mxu0
    %184 = vdwg.mxu0
    %185 = vst [vmem:[#allocation10] sm:$0xff] %v177
    %186 = vst [vmem:[#allocation10 + $0x8] sm:$0xff] %v182
    %v187 = vld [vmem:[#allocation5] sm:$0xff]
    %v188 = vld [vmem:[#allocation5 + $0x8] sm:$0xff]
    %v189 = vld [vmem:[#allocation5 + $0x10] sm:$0xff]
    %v190 = vld [vmem:[#allocation5 + $0x18] sm:$0xff]
    %v191 = vld [vmem:[#allocation5 + $0x20] sm:$0xff]
    %v192 = vld [vmem:[#allocation5 + $0x28] sm:$0xff]
    %v193 = vld [vmem:[#allocation5 + $0x30] sm:$0xff]
    %v194 = vld [vmem:[#allocation5 + $0x38] sm:$0xff]
    %v195 = vld [vmem:[#allocation5 + $0x40] sm:$0xff]
    %v196 = vld [vmem:[#allocation5 + $0x48] sm:$0xff]
    %v197 = vld [vmem:[#allocation5 + $0x50] sm:$0xff]
    %v198 = vld [vmem:[#allocation5 + $0x58] sm:$0xff]
    %v199 = vld [vmem:[#allocation5 + $0x60] sm:$0xff]
    %v200 = vld [vmem:[#allocation5 + $0x68] sm:$0xff]
    %v201 = vld [vmem:[#allocation5 + $0x70] sm:$0xff]
    %v202 = vld [vmem:[#allocation5 + $0x78] sm:$0xff]
    %v203 = vld [vmem:[%s2] sm:$0x1]
    %v204 = vld [vmem:[#allocation7] sm:$0xff]
    %v205 = vld [vmem:[#allocation7 + $0x8] sm:$0xff]
    %v206 = vld [vmem:[#allocation7 + $0x10] sm:$0xff]
    %v207 = vld [vmem:[#allocation7 + $0x18] sm:$0xff]
    %v208 = vld [vmem:[#allocation7 + $0x20] sm:$0xff]
    %v209 = vld [vmem:[#allocation7 + $0x28] sm:$0xff]
    %v210 = vld [vmem:[#allocation7 + $0x30] sm:$0xff]
    %v211 = vld [vmem:[#allocation7 + $0x38] sm:$0xff]
    %v212 = vld [vmem:[#allocation7 + $0x40] sm:$0xff]
    %v213 = vld [vmem:[#allocation7 + $0x48] sm:$0xff]
    %v214 = vld [vmem:[#allocation7 + $0x50] sm:$0xff]
    %v215 = vld [vmem:[#allocation7 + $0x58] sm:$0xff]
    %v216 = vld [vmem:[#allocation7 + $0x60] sm:$0xff]
    %v217 = vld [vmem:[#allocation7 + $0x68] sm:$0xff]
    %v218 = vld [vmem:[#allocation7 + $0x70] sm:$0xff]
    %v219 = vld [vmem:[#allocation7 + $0x78] sm:$0xff]
    %v220 = vld [vmem:[%s4] sm:$0x1]
    %v222 = vlaneseq
    %v223 = vshrl.u32 %v222, 7
    %v224 = vsub.s32 0, %v223
    %v225 = vrot.slane %v203, %v224
    %227 = vmatprep.subr.mxu0 0.0
    %228 = vmatpush1.msra.mxu0 %v202
    %229 = vmatprep.subr.mxu0 0.0
    %230 = vmatpush1.msra.mxu0 %v201
    %231 = vmatprep.subr.mxu0 0.0
    %232 = vmatpush1.msra.mxu0 %v200
    %233 = vmatprep.subr.mxu0 0.0
    %234 = vmatpush1.msra.mxu0 %v199
    %235 = vmatprep.subr.mxu0 0.0
    %236 = vmatpush1.msra.mxu0 %v198
    %237 = vmatprep.subr.mxu0 0.0
    %238 = vmatpush1.msra.mxu0 %v197
    %239 = vmatprep.subr.mxu0 0.0
    %240 = vmatpush1.msra.mxu0 %v196
    %241 = vmatprep.subr.mxu0 0.0
    %242 = vmatpush1.msra.mxu0 %v195
    %243 = vmatprep.subr.mxu0 0.0
    %244 = vmatpush1.msra.mxu0 %v194
    %245 = vmatprep.subr.mxu0 0.0
    %246 = vmatpush1.msra.mxu0 %v193
    %247 = vmatprep.subr.mxu0 0.0
    %248 = vmatpush1.msra.mxu0 %v192
    %249 = vmatprep.subr.mxu0 0.0
    %250 = vmatpush1.msra.mxu0 %v191
    %251 = vmatprep.subr.mxu0 0.0
    %252 = vmatpush1.msra.mxu0 %v190
    %253 = vmatprep.subr.mxu0 0.0
    %254 = vmatpush1.msra.mxu0 %v189
    %255 = vmatprep.subr.mxu0 0.0
    %256 = vmatpush1.msra.mxu0 %v188
    %257 = vmatprep.subr.mxu0 0.0
    %258 = vmatpush1.msra.mxu0 %v187
    %259 = vmatprep.subr.mxu0 0.0
    %260 = vmatpush2.msra.mxu0 0.0
    %261 = vmatprep.subr.mxu0 0.0
    %262 = vmatpush2.msra.mxu0 0.0
    %263 = vmatprep.subr.mxu0 0.0
    %264 = vmatpush2.msra.mxu0 0.0
    %265 = vmatprep.subr.mxu0 0.0
    %266 = vmatpush2.msra.mxu0 0.0
    %267 = vmatprep.subr.mxu0 0.0
    %268 = vmatpush2.msra.mxu0 0.0
    %269 = vmatprep.subr.mxu0 0.0
    %270 = vmatpush2.msra.mxu0 0.0
    %271 = vmatprep.subr.mxu0 0.0
    %272 = vmatpush2.msra.mxu0 0.0
    %273 = vmatprep.subr.mxu0 0.0
    %274 = vmatpush2.msra.mxu0 0.0
    %275 = vmatprep.subr.mxu0 0.0
    %276 = vmatpush2.msra.mxu0 0.0
    %277 = vmatprep.subr.mxu0 0.0
    %278 = vmatpush2.msra.mxu0 0.0
    %279 = vmatprep.subr.mxu0 0.0
    %280 = vmatpush2.msra.mxu0 0.0
    %281 = vmatprep.subr.mxu0 0.0
    %282 = vmatpush2.msra.mxu0 0.0
    %283 = vmatprep.subr.mxu0 0.0
    %284 = vmatpush2.msra.mxu0 0.0
    %285 = vmatprep.subr.mxu0 0.0
    %286 = vmatpush2.msra.mxu0 0.0
    %287 = vmatprep.subr.mxu0 0.0
    %288 = vmatpush2.msra.mxu0 0.0
    %289 = vmatprep.subr.mxu0 0.0
    %290 = vmatpush2.msra.mxu0 0.0
    %291 = vmatprep.mubr.f32.mxu0 0.0
    %292 = vmatmul.mubr.f32.gmra.mxu0 %v85
    %v293 = vpop.f32.mrf.mxu0
    %v294 = vadd.f32 %v225, %v293
    %v295 = vpop.f32.mrf.mxu0
    %296 = vmatprep.mubr.f32.mxu0 0.0
    %297 = vmatmul.mubr.f32.gmra.mxu0 %v86
    %v298 = vpop.f32.mrf.mxu0
    %v299 = vadd.f32 %v225, %v298
    %v300 = vpop.f32.mrf.mxu0
    %301 = vdwg.mxu0
    %v302 = vmax.f32 %v294, 0.0
    %v303 = vmax.f32 %v299, 0.0
    %304 = vmatprep.subr.mxu0 0.0
    %305 = vmatpush1.msra.mxu0 %v219
    %306 = vmatprep.subr.mxu0 0.0
    %307 = vmatpush1.msra.mxu0 %v218
    %308 = vmatprep.subr.mxu0 0.0
    %309 = vmatpush1.msra.mxu0 %v217
    %310 = vmatprep.subr.mxu0 0.0
    %311 = vmatpush1.msra.mxu0 %v216
    %312 = vmatprep.subr.mxu0 0.0
    %313 = vmatpush1.msra.mxu0 %v215
    %314 = vmatprep.subr.mxu0 0.0
    %315 = vmatpush1.msra.mxu0 %v214
    %316 = vmatprep.subr.mxu0 0.0
    %317 = vmatpush1.msra.mxu0 %v213
    %318 = vmatprep.subr.mxu0 0.0
    %319 = vmatpush1.msra.mxu0 %v212
    %320 = vmatprep.subr.mxu0 0.0
    %321 = vmatpush1.msra.mxu0 %v211
    %322 = vmatprep.subr.mxu0 0.0
    %323 = vmatpush1.msra.mxu0 %v210
    %324 = vmatprep.subr.mxu0 0.0
    %325 = vmatpush1.msra.mxu0 %v209
    %326 = vmatprep.subr.mxu0 0.0
    %327 = vmatpush1.msra.mxu0 %v208
    %328 = vmatprep.subr.mxu0 0.0
    %329 = vmatpush1.msra.mxu0 %v207
    %330 = vmatprep.subr.mxu0 0.0
    %331 = vmatpush1.msra.mxu0 %v206
    %332 = vmatprep.subr.mxu0 0.0
    %333 = vmatpush1.msra.mxu0 %v205
    %334 = vmatprep.subr.mxu0 0.0
    %335 = vmatpush1.msra.mxu0 %v204
    %336 = vmatprep.subr.mxu0 0.0
    %337 = vmatpush2.msra.mxu0 0.0
    %338 = vmatprep.subr.mxu0 0.0
    %339 = vmatpush2.msra.mxu0 0.0
    %340 = vmatprep.subr.mxu0 0.0
    %341 = vmatpush2.msra.mxu0 0.0
    %342 = vmatprep.subr.mxu0 0.0
    %343 = vmatpush2.msra.mxu0 0.0
    %344 = vmatprep.subr.mxu0 0.0
    %345 = vmatpush2.msra.mxu0 0.0
    %346 = vmatprep.subr.mxu0 0.0
    %347 = vmatpush2.msra.mxu0 0.0
    %348 = vmatprep.subr.mxu0 0.0
    %349 = vmatpush2.msra.mxu0 0.0
    %350 = vmatprep.subr.mxu0 0.0
    %351 = vmatpush2.msra.mxu0 0.0
    %352 = vmatprep.subr.mxu0 0.0
    %353 = vmatpush2.msra.mxu0 0.0
    %354 = vmatprep.subr.mxu0 0.0
    %355 = vmatpush2.msra.mxu0 0.0
    %356 = vmatprep.subr.mxu0 0.0
    %357 = vmatpush2.msra.mxu0 0.0
    %358 = vmatprep.subr.mxu0 0.0
    %359 = vmatpush2.msra.mxu0 0.0
    %360 = vmatprep.subr.mxu0 0.0
    %361 = vmatpush2.msra.mxu0 0.0
    %362 = vmatprep.subr.mxu0 0.0
    %363 = vmatpush2.msra.mxu0 0.0
    %364 = vmatprep.subr.mxu0 0.0
    %365 = vmatpush2.msra.mxu0 0.0
    %366 = vmatprep.subr.mxu0 0.0
    %367 = vmatpush2.msra.mxu0 0.0
    %368 = vmatprep.mubr.f32.mxu0 0.0
    %369 = vmatmul.mubr.f32.gmra.mxu0 %v302
    %v370 = vpop.f32.mrf.mxu0
    %v371 = vadd.f32 0.0, %v370
    %v372 = vpop.f32.mrf.mxu0
    %373 = vmatprep.mubr.f32.mxu0 0.0
    %374 = vmatmul.mubr.f32.gmra.mxu0 %v303
    %v375 = vpop.f32.mrf.mxu0
    %v376 = vadd.f32 0.0, %v375
    %v377 = vpop.f32.mrf.mxu0
    %378 = vdwg.mxu0
    %v379 = vadd.f32 %v85, %v371
    %v380 = vadd.f32 %v86, %v376
    %v382 = vlaneseq
    %v383 = vshrl.u32 %v382, 7
    %v384 = vsub.s32 0, %v383
    %v385 = vrot.slane %v220, %v384
    %v387 = vadd.f32 %v379, %v385
    %v388 = vadd.f32 %v380, %v385
    %389 = vmatprep.subr.mxu0 0.0
    %390 = vmatpush1.msra.mxu0 %v102
    %391 = vmatprep.subr.mxu0 0.0
    %392 = vmatpush1.msra.mxu0 %v101
    %393 = vmatprep.subr.mxu0 0.0
    %394 = vmatpush1.msra.mxu0 %v100
    %395 = vmatprep.subr.mxu0 0.0
    %396 = vmatpush1.msra.mxu0 %v99
    %397 = vmatprep.subr.mxu0 0.0
    %398 = vmatpush1.msra.mxu0 %v98
    %399 = vmatprep.subr.mxu0 0.0
    %400 = vmatpush1.msra.mxu0 %v97
    %401 = vmatprep.subr.mxu0 0.0
    %402 = vmatpush1.msra.mxu0 %v96
    %403 = vmatprep.subr.mxu0 0.0
    %404 = vmatpush1.msra.mxu0 %v95
    %405 = vmatprep.subr.mxu0 0.0
    %406 = vmatpush1.msra.mxu0 %v94
    %407 = vmatprep.subr.mxu0 0.0
    %408 = vmatpush1.msra.mxu0 %v93
    %409 = vmatprep.subr.mxu0 0.0
    %410 = vmatpush1.msra.mxu0 %v92
    %411 = vmatprep.subr.mxu0 0.0
    %412 = vmatpush1.msra.mxu0 %v91
    %413 = vmatprep.subr.mxu0 0.0
    %414 = vmatpush1.msra.mxu0 %v90
    %415 = vmatprep.subr.mxu0 0.0
    %416 = vmatpush1.msra.mxu0 %v89
    %417 = vmatprep.subr.mxu0 0.0
    %418 = vmatpush1.msra.mxu0 %v88
    %419 = vmatprep.subr.mxu0 0.0
    %420 = vmatpush1.msra.mxu0 %v87
    %421 = vmatprep.subr.mxu0 0.0
    %422 = vmatpush2.msra.mxu0 0.0
    %423 = vmatprep.subr.mxu0 0.0
    %424 = vmatpush2.msra.mxu0 0.0
    %425 = vmatprep.subr.mxu0 0.0
    %426 = vmatpush2.msra.mxu0 0.0
    %427 = vmatprep.subr.mxu0 0.0
    %428 = vmatpush2.msra.mxu0 0.0
    %429 = vmatprep.subr.mxu0 0.0
    %430 = vmatpush2.msra.mxu0 0.0
    %431 = vmatprep.subr.mxu0 0.0
    %432 = vmatpush2.msra.mxu0 0.0
    %433 = vmatprep.subr.mxu0 0.0
    %434 = vmatpush2.msra.mxu0 0.0
    %435 = vmatprep.subr.mxu0 0.0
    %436 = vmatpush2.msra.mxu0 0.0
    %437 = vmatprep.subr.mxu0 0.0
    %438 = vmatpush2.msra.mxu0 0.0
    %439 = vmatprep.subr.mxu0 0.0
    %440 = vmatpush2.msra.mxu0 0.0
    %441 = vmatprep.subr.mxu0 0.0
    %442 = vmatpush2.msra.mxu0 0.0
    %443 = vmatprep.subr.mxu0 0.0
    %444 = vmatpush2.msra.mxu0 0.0
    %445 = vmatprep.subr.mxu0 0.0
    %446 = vmatpush2.msra.mxu0 0.0
    %447 = vmatprep.subr.mxu0 0.0
    %448 = vmatpush2.msra.mxu0 0.0
    %449 = vmatprep.subr.mxu0 0.0
    %450 = vmatpush2.msra.mxu0 0.0
    %451 = vmatprep.subr.mxu0 0.0
    %452 = vmatpush2.msra.mxu0 0.0
    %453 = vmatprep.mubr.f32.mxu0 0.0
    %454 = vmatmul.mubr.f32.gmra.mxu0 %v387
    %v455 = vpop.f32.mrf.mxu0
    %v456 = vadd.f32 %v108, %v455
    %v457 = vpop.f32.mrf.mxu0
    %458 = vmatprep.mubr.f32.mxu0 0.0
    %459 = vmatmul.mubr.f32.gmra.mxu0 %v388
    %v460 = vpop.f32.mrf.mxu0
    %v461 = vadd.f32 %v108, %v460
    %v462 = vpop.f32.mrf.mxu0
    %463 = vdwg.mxu0
    %s464 = scalar_lea.vmem [#allocation10], 16
    %465 = vst [vmem:[%s464] sm:$0xff] %v456
    %466 = vst [vmem:[%s464 + $0x8] sm:$0xff] %v461
    %s467 = scalar_lea.vmem [#allocation5], 128
    %v468 = vld [vmem:[%s467] sm:$0xff]
    %v469 = vld [vmem:[%s467 + $0x8] sm:$0xff]
    %v470 = vld [vmem:[%s467 + $0x10] sm:$0xff]
    %v471 = vld [vmem:[%s467 + $0x18] sm:$0xff]
    %v472 = vld [vmem:[%s467 + $0x20] sm:$0xff]
    %v473 = vld [vmem:[%s467 + $0x28] sm:$0xff]
    %v474 = vld [vmem:[%s467 + $0x30] sm:$0xff]
    %v475 = vld [vmem:[%s467 + $0x38] sm:$0xff]
    %v476 = vld [vmem:[%s467 + $0x40] sm:$0xff]
    %v477 = vld [vmem:[%s467 + $0x48] sm:$0xff]
    %v478 = vld [vmem:[%s467 + $0x50] sm:$0xff]
    %v479 = vld [vmem:[%s467 + $0x58] sm:$0xff]
    %v480 = vld [vmem:[%s467 + $0x60] sm:$0xff]
    %v481 = vld [vmem:[%s467 + $0x68] sm:$0xff]
    %v482 = vld [vmem:[%s467 + $0x70] sm:$0xff]
    %v483 = vld [vmem:[%s467 + $0x78] sm:$0xff]
    %s484 = scalar_lea.vmem %s2, 1
    %v485 = vld [vmem:[%s484] sm:$0x1]
    %s486 = scalar_lea.vmem [#allocation7], 128
    %v487 = vld [vmem:[%s486] sm:$0xff]
    %v488 = vld [vmem:[%s486 + $0x8] sm:$0xff]
    %v489 = vld [vmem:[%s486 + $0x10] sm:$0xff]
    %v490 = vld [vmem:[%s486 + $0x18] sm:$0xff]
    %v491 = vld [vmem:[%s486 + $0x20] sm:$0xff]
    %v492 = vld [vmem:[%s486 + $0x28] sm:$0xff]
    %v493 = vld [vmem:[%s486 + $0x30] sm:$0xff]
    %v494 = vld [vmem:[%s486 + $0x38] sm:$0xff]
    %v495 = vld [vmem:[%s486 + $0x40] sm:$0xff]
    %v496 = vld [vmem:[%s486 + $0x48] sm:$0xff]
    %v497 = vld [vmem:[%s486 + $0x50] sm:$0xff]
    %v498 = vld [vmem:[%s486 + $0x58] sm:$0xff]
    %v499 = vld [vmem:[%s486 + $0x60] sm:$0xff]
    %v500 = vld [vmem:[%s486 + $0x68] sm:$0xff]
    %v501 = vld [vmem:[%s486 + $0x70] sm:$0xff]
    %v502 = vld [vmem:[%s486 + $0x78] sm:$0xff]
    %s503 = scalar_lea.vmem %s4, 1
    %v504 = vld [vmem:[%s503] sm:$0x1]
    %v506 = vlaneseq
    %v507 = vshrl.u32 %v506, 7
    %v508 = vsub.s32 0, %v507
    %v509 = vrot.slane %v485, %v508
    %511 = vmatprep.subr.mxu0 0.0
    %512 = vmatpush1.msra.mxu0 %v483
    %513 = vmatprep.subr.mxu0 0.0
    %514 = vmatpush1.msra.mxu0 %v482
    %515 = vmatprep.subr.mxu0 0.0
    %516 = vmatpush1.msra.mxu0 %v481
    %517 = vmatprep.subr.mxu0 0.0
    %518 = vmatpush1.msra.mxu0 %v480
    %519 = vmatprep.subr.mxu0 0.0
    %520 = vmatpush1.msra.mxu0 %v479
    %521 = vmatprep.subr.mxu0 0.0
    %522 = vmatpush1.msra.mxu0 %v478
    %523 = vmatprep.subr.mxu0 0.0
    %524 = vmatpush1.msra.mxu0 %v477
    %525 = vmatprep.subr.mxu0 0.0
    %526 = vmatpush1.msra.mxu0 %v476
    %527 = vmatprep.subr.mxu0 0.0
    %528 = vmatpush1.msra.mxu0 %v475
    %529 = vmatprep.subr.mxu0 0.0
    %530 = vmatpush1.msra.mxu0 %v474
    %531 = vmatprep.subr.mxu0 0.0
    %532 = vmatpush1.msra.mxu0 %v473
    %533 = vmatprep.subr.mxu0 0.0
    %534 = vmatpush1.msra.mxu0 %v472
    %535 = vmatprep.subr.mxu0 0.0
    %536 = vmatpush1.msra.mxu0 %v471
    %537 = vmatprep.subr.mxu0 0.0
    %538 = vmatpush1.msra.mxu0 %v470
    %539 = vmatprep.subr.mxu0 0.0
    %540 = vmatpush1.msra.mxu0 %v469
    %541 = vmatprep.subr.mxu0 0.0
    %542 = vmatpush1.msra.mxu0 %v468
    %543 = vmatprep.subr.mxu0 0.0
    %544 = vmatpush2.msra.mxu0 0.0
    %545 = vmatprep.subr.mxu0 0.0
    %546 = vmatpush2.msra.mxu0 0.0
    %547 = vmatprep.subr.mxu0 0.0
    %548 = vmatpush2.msra.mxu0 0.0
    %549 = vmatprep.subr.mxu0 0.0
    %550 = vmatpush2.msra.mxu0 0.0
    %551 = vmatprep.subr.mxu0 0.0
    %552 = vmatpush2.msra.mxu0 0.0
    %553 = vmatprep.subr.mxu0 0.0
    %554 = vmatpush2.msra.mxu0 0.0
    %555 = vmatprep.subr.mxu0 0.0
    %556 = vmatpush2.msra.mxu0 0.0
    %557 = vmatprep.subr.mxu0 0.0
    %558 = vmatpush2.msra.mxu0 0.0
    %559 = vmatprep.subr.mxu0 0.0
    %560 = vmatpush2.msra.mxu0 0.0
    %561 = vmatprep.subr.mxu0 0.0
    %562 = vmatpush2.msra.mxu0 0.0
    %563 = vmatprep.subr.mxu0 0.0
    %564 = vmatpush2.msra.mxu0 0.0
    %565 = vmatprep.subr.mxu0 0.0
    %566 = vmatpush2.msra.mxu0 0.0
    %567 = vmatprep.subr.mxu0 0.0
    %568 = vmatpush2.msra.mxu0 0.0
    %569 = vmatprep.subr.mxu0 0.0
    %570 = vmatpush2.msra.mxu0 0.0
    %571 = vmatprep.subr.mxu0 0.0
    %572 = vmatpush2.msra.mxu0 0.0
    %573 = vmatprep.subr.mxu0 0.0
    %574 = vmatpush2.msra.mxu0 0.0
    %575 = vmatprep.mubr.f32.mxu0 0.0
    %576 = vmatmul.mubr.f32.gmra.mxu0 %v387
    %v577 = vpop.f32.mrf.mxu0
    %v578 = vadd.f32 %v509, %v577
    %v579 = vpop.f32.mrf.mxu0
    %580 = vmatprep.mubr.f32.mxu0 0.0
    %581 = vmatmul.mubr.f32.gmra.mxu0 %v388
    %v582 = vpop.f32.mrf.mxu0
    %v583 = vadd.f32 %v509, %v582
    %v584 = vpop.f32.mrf.mxu0
    %585 = vdwg.mxu0
    %v586 = vmax.f32 %v578, 0.0
    %v587 = vmax.f32 %v583, 0.0
    %588 = vmatprep.subr.mxu0 0.0
    %589 = vmatpush1.msra.mxu0 %v502
    %590 = vmatprep.subr.mxu0 0.0
    %591 = vmatpush1.msra.mxu0 %v501
    %592 = vmatprep.subr.mxu0 0.0
    %593 = vmatpush1.msra.mxu0 %v500
    %594 = vmatprep.subr.mxu0 0.0
    %595 = vmatpush1.msra.mxu0 %v499
    %596 = vmatprep.subr.mxu0 0.0
    %597 = vmatpush1.msra.mxu0 %v498
    %598 = vmatprep.subr.mxu0 0.0
    %599 = vmatpush1.msra.mxu0 %v497
    %600 = vmatprep.subr.mxu0 0.0
    %601 = vmatpush1.msra.mxu0 %v496
    %602 = vmatprep.subr.mxu0 0.0
    %603 = vmatpush1.msra.mxu0 %v495
    %604 = vmatprep.subr.mxu0 0.0
    %605 = vmatpush1.msra.mxu0 %v494
    %606 = vmatprep.subr.mxu0 0.0
    %607 = vmatpush1.msra.mxu0 %v493
    %608 = vmatprep.subr.mxu0 0.0
    %609 = vmatpush1.msra.mxu0 %v492
    %610 = vmatprep.subr.mxu0 0.0
    %611 = vmatpush1.msra.mxu0 %v491
    %612 = vmatprep.subr.mxu0 0.0
    %613 = vmatpush1.msra.mxu0 %v490
    %614 = vmatprep.subr.mxu0 0.0
    %615 = vmatpush1.msra.mxu0 %v489
    %616 = vmatprep.subr.mxu0 0.0
    %617 = vmatpush1.msra.mxu0 %v488
    %618 = vmatprep.subr.mxu0 0.0
    %619 = vmatpush1.msra.mxu0 %v487
    %620 = vmatprep.subr.mxu0 0.0
    %621 = vmatpush2.msra.mxu0 0.0
    %622 = vmatprep.subr.mxu0 0.0
    %623 = vmatpush2.msra.mxu0 0.0
    %624 = vmatprep.subr.mxu0 0.0
    %625 = vmatpush2.msra.mxu0 0.0
    %626 = vmatprep.subr.mxu0 0.0
    %627 = vmatpush2.msra.mxu0 0.0
    %628 = vmatprep.subr.mxu0 0.0
    %629 = vmatpush2.msra.mxu0 0.0
    %630 = vmatprep.subr.mxu0 0.0
    %631 = vmatpush2.msra.mxu0 0.0
    %632 = vmatprep.subr.mxu0 0.0
    %633 = vmatpush2.msra.mxu0 0.0
    %634 = vmatprep.subr.mxu0 0.0
    %635 = vmatpush2.msra.mxu0 0.0
    %636 = vmatprep.subr.mxu0 0.0
    %637 = vmatpush2.msra.mxu0 0.0
    %638 = vmatprep.subr.mxu0 0.0
    %639 = vmatpush2.msra.mxu0 0.0
    %640 = vmatprep.subr.mxu0 0.0
    %641 = vmatpush2.msra.mxu0 0.0
    %642 = vmatprep.subr.mxu0 0.0
    %643 = vmatpush2.msra.mxu0 0.0
    %644 = vmatprep.subr.mxu0 0.0
    %645 = vmatpush2.msra.mxu0 0.0
    %646 = vmatprep.subr.mxu0 0.0
    %647 = vmatpush2.msra.mxu0 0.0
    %648 = vmatprep.subr.mxu0 0.0
    %649 = vmatpush2.msra.mxu0 0.0
    %650 = vmatprep.subr.mxu0 0.0
    %651 = vmatpush2.msra.mxu0 0.0
    %652 = vmatprep.mubr.f32.mxu0 0.0
    %653 = vmatmul.mubr.f32.gmra.mxu0 %v586
    %v654 = vpop.f32.mrf.mxu0
    %v655 = vadd.f32 0.0, %v654
    %v656 = vpop.f32.mrf.mxu0
    %657 = vmatprep.mubr.f32.mxu0 0.0
    %658 = vmatmul.mubr.f32.gmra.mxu0 %v587
    %v659 = vpop.f32.mrf.mxu0
    %v660 = vadd.f32 0.0, %v659
    %v661 = vpop.f32.mrf.mxu0
    %662 = vdwg.mxu0
    %v663 = vadd.f32 %v387, %v655
    %v664 = vadd.f32 %v388, %v660
    %v666 = vlaneseq
    %v667 = vshrl.u32 %v666, 7
    %v668 = vsub.s32 0, %v667
    %v669 = vrot.slane %v504, %v668
    %v671 = vadd.f32 %v663, %v669
    %v672 = vadd.f32 %v664, %v669
    %673 = vmatprep.subr.mxu0 0.0
    %674 = vmatpush1.msra.mxu0 %v102
    %675 = vmatprep.subr.mxu0 0.0
    %676 = vmatpush1.msra.mxu0 %v101
    %677 = vmatprep.subr.mxu0 0.0
    %678 = vmatpush1.msra.mxu0 %v100
    %679 = vmatprep.subr.mxu0 0.0
    %680 = vmatpush1.msra.mxu0 %v99
    %681 = vmatprep.subr.mxu0 0.0
    %682 = vmatpush1.msra.mxu0 %v98
    %683 = vmatprep.subr.mxu0 0.0
    %684 = vmatpush1.msra.mxu0 %v97
    %685 = vmatprep.subr.mxu0 0.0
    %686 = vmatpush1.msra.mxu0 %v96
    %687 = vmatprep.subr.mxu0 0.0
    %688 = vmatpush1.msra.mxu0 %v95
    %689 = vmatprep.subr.mxu0 0.0
    %690 = vmatpush1.msra.mxu0 %v94
    %691 = vmatprep.subr.mxu0 0.0
    %692 = vmatpush1.msra.mxu0 %v93
    %693 = vmatprep.subr.mxu0 0.0
    %694 = vmatpush1.msra.mxu0 %v92
    %695 = vmatprep.subr.mxu0 0.0
    %696 = vmatpush1.msra.mxu0 %v91
    %697 = vmatprep.subr.mxu0 0.0
    %698 = vmatpush1.msra.mxu0 %v90
    %699 = vmatprep.subr.mxu0 0.0
    %700 = vmatpush1.msra.mxu0 %v89
    %701 = vmatprep.subr.mxu0 0.0
    %702 = vmatpush1.msra.mxu0 %v88
    %703 = vmatprep.subr.mxu0 0.0
    %704 = vmatpush1.msra.mxu0 %v87
    %705 = vmatprep.subr.mxu0 0.0
    %706 = vmatpush2.msra.mxu0 0.0
    %707 = vmatprep.subr.mxu0 0.0
    %708 = vmatpush2.msra.mxu0 0.0
    %709 = vmatprep.subr.mxu0 0.0
    %710 = vmatpush2.msra.mxu0 0.0
    %711 = vmatprep.subr.mxu0 0.0
    %712 = vmatpush2.msra.mxu0 0.0
    %713 = vmatprep.subr.mxu0 0.0
    %714 = vmatpush2.msra.mxu0 0.0
    %715 = vmatprep.subr.mxu0 0.0
    %716 = vmatpush2.msra.mxu0 0.0
    %717 = vmatprep.subr.mxu0 0.0
    %718 = vmatpush2.msra.mxu0 0.0
    %719 = vmatprep.subr.mxu0 0.0
    %720 = vmatpush2.msra.mxu0 0.0
    %721 = vmatprep.subr.mxu0 0.0
    %722 = vmatpush2.msra.mxu0 0.0
    %723 = vmatprep.subr.mxu0 0.0
    %724 = vmatpush2.msra.mxu0 0.0
    %725 = vmatprep.subr.mxu0 0.0
    %726 = vmatpush2.msra.mxu0 0.0
    %727 = vmatprep.subr.mxu0 0.0
    %728 = vmatpush2.msra.mxu0 0.0
    %729 = vmatprep.subr.mxu0 0.0
    %730 = vmatpush2.msra.mxu0 0.0
    %731 = vmatprep.subr.mxu0 0.0
    %732 = vmatpush2.msra.mxu0 0.0
    %733 = vmatprep.subr.mxu0 0.0
    %734 = vmatpush2.msra.mxu0 0.0
    %735 = vmatprep.subr.mxu0 0.0
    %736 = vmatpush2.msra.mxu0 0.0
    %737 = vmatprep.mubr.f32.mxu0 0.0
    %738 = vmatmul.mubr.f32.gmra.mxu0 %v671
    %v739 = vpop.f32.mrf.mxu0
    %v740 = vadd.f32 %v108, %v739
    %v741 = vpop.f32.mrf.mxu0
    %742 = vmatprep.mubr.f32.mxu0 0.0
    %743 = vmatmul.mubr.f32.gmra.mxu0 %v672
    %v744 = vpop.f32.mrf.mxu0
    %v745 = vadd.f32 %v108, %v744
    %v746 = vpop.f32.mrf.mxu0
    %747 = vdwg.mxu0
    %s748 = scalar_lea.vmem [#allocation10], 32
    %749 = vst [vmem:[%s748] sm:$0xff] %v740
    %750 = vst [vmem:[%s748 + $0x8] sm:$0xff] %v745
    %751 = vst [vmem:[#allocation11] sm:$0xff] %v671
    %752 = vst [vmem:[#allocation11 + $0x8] sm:$0xff] %v672
    // Predicated region
    $region46: #{tpu_custom_call.1} parent=1 // pred_check
      _
    $region47: #{tpu_custom_call.1} parent=1 // pred_check_branch
      %754 = sbr.rel (0) target = $region49
    $region48: #{tpu_custom_call.1} parent=1 // pred_region
      %s756 = ssub.s32 768, 768
      %757 = vsyncadd [#allocation4], %s756
      %s758 = sshll.u32 [#allocation10], 4
      %s759 = int_to_ptr.vmem [resolvable:$true] %s758
      %764 = dma.vmem_to_hbm [thread:$0]  %s759, 768, %s7, [#allocation4], 128, 128, 8
    $region49: #{tpu_custom_call.1} parent=1 // pred_fallthru
      _
    // Predicated region
    $region50: #{tpu_custom_call.1} parent=1 // pred_check
      _
    $region51: #{tpu_custom_call.1} parent=1 // pred_check_branch
      %766 = sbr.rel (0) target = $region53
    $region52: #{tpu_custom_call.1} parent=1 // pred_region
      %s768 = ssub.s32 256, 256
      %769 = vsyncadd [#allocation12], %s768
      %s770 = sshll.u32 [#allocation11], 4
      %s771 = int_to_ptr.vmem [resolvable:$true] %s770
      %776 = dma.vmem_to_hbm [thread:$0]  %s771, 256, %s8, [#allocation12], 128, 128, 8
    $region53: #{tpu_custom_call.1} parent=1 // pred_fallthru
      _
    // Predicated region
    $region54: #{tpu_custom_call.1} parent=1 // pred_check
      _
    $region55: #{tpu_custom_call.1} parent=1 // pred_check_branch
      %778 = sbr.rel (0) target = $region57
    $region56: #{tpu_custom_call.1} parent=1 // pred_region
      %779 = dma.done [#allocation4], 768
    $region57: #{tpu_custom_call.1} parent=1 // pred_fallthru
      _
    // Predicated region
    $region58: #{tpu_custom_call.1} parent=1 // pred_check
      _
    $region59: #{tpu_custom_call.1} parent=1 // pred_check_branch
      %781 = sbr.rel (0) target = $region61
    $region60: #{tpu_custom_call.1} parent=1 // pred_region
      %782 = dma.done [#allocation12], 256
    $region61: #{tpu_custom_call.1} parent=1 // pred_fallthru
      _
    %783 = vsyncpa [#allocation3], 1
    %784 = vsyncpa [#allocation6], 1
    %785 = vsyncpa [#allocation9], 1
    %786 = vsyncpa [#allocation4], 1
    %787 = vsyncpa [#allocation12], 1

</llo_original>
